<compile_context>
chip_gen: v5e
topology: v5e:2x2
jax: 0.10.0
libtpu: 0.0.40
codegen_flags: <defaults>
</compile_context>

<pallas_src>
import functools

import jax
import jax.numpy as jnp
from jax.experimental import pallas as pl
from jax.experimental.pallas import tpu as pltpu


def _round_up(x, m):
    return -(-x // m) * m


# ---------------------------------------------------------------------------
# Fused whole-MLP kernel: weights VMEM-resident, grid over batch tiles.
# ---------------------------------------------------------------------------
def _mlp_kernel(*refs, num_layers, act_flags, scalar_lane_out):
    """refs = (x_ref, w0, b0, w1, b1, ..., o_ref).

    Per batch tile: h = x; for each layer: h = h @ W + b; if act_flags[l]:
    h = SiLU(h).  Matmuls use the operands' native dtype on the MXU with f32
    accumulation; bias-add and SiLU stay in f32.
    """
    x_ref = refs[0]
    o_ref = refs[-1]
    params = refs[1:-1]

    h = x_ref[...]
    for l in range(num_layers):
        w = params[2 * l][...]
        b = params[2 * l + 1][...]
        if scalar_lane_out and l == num_layers - 1:
            # Final out_dim == 1 head: w is passed as a (1, K) row.  Instead of
            # a (tile_b, 1) matmul result (masked 1-lane stores or a 128x
            # zero-padded writeback), fold 128 consecutive batch rows onto the
            # lane axis: the reshape is a sublane-group split (layout no-op),
            # the K-contraction is a VPU multiply + XLU lane-reduce, and the
            # store is a full-lane vst of only useful bytes.
            rows = o_ref.shape[0]                          # tile_b // 128
            hv = h.reshape(rows, 128, h.shape[-1]).astype(jnp.float32)
            o = jnp.sum(hv * w.astype(jnp.float32), axis=-1)   # (rows, 128)
            o = o + b.astype(jnp.float32)                      # (1,1) broadcast
            o_ref[...] = o.astype(o_ref.dtype)
            return
        # Native-dtype MXU operands (bf16 stays bf16), f32 accumulation.
        h = jnp.dot(h.astype(w.dtype), w, preferred_element_type=jnp.float32)
        h = h + b.astype(jnp.float32)
        if act_flags[l]:
            # SiLU(x) = x * sigmoid(x); sigmoid -> EUP, mul -> VPU.
            h = h * jax.nn.sigmoid(h)
    o_ref[...] = h.astype(o_ref.dtype)


# ---------------------------------------------------------------------------
# Fallback: per-layer M/N/K-tiled Linear (+bias, +SiLU) for layers too wide to
# keep all weights VMEM-resident (mandatory on v7x's 64 MiB for 4k x 4k f32).
# ---------------------------------------------------------------------------
def _linear_kernel(x_ref, w_ref, b_ref, o_ref, acc_ref, *, apply_act):
    @pl.when(pl.program_id(2) == 0)
    def _():
        acc_ref[...] = jnp.zeros_like(acc_ref)

    acc_ref[...] += jnp.dot(x_ref[...].astype(w_ref.dtype), w_ref[...],
                            preferred_element_type=jnp.float32)

    @pl.when(pl.program_id(2) == pl.num_programs(2) - 1)
    def _():
        h = acc_ref[...] + b_ref[...].astype(jnp.float32)
        if apply_act:
            h = h * jax.nn.sigmoid(h)
        o_ref[...] = h.astype(o_ref.dtype)


def _linear_act_pallas(x, w, b, apply_act, *, tm=256, tn=512, tk=512):
    M, K = x.shape
    _, N = w.shape
    out_dtype = x.dtype
    sub = 16 if x.dtype == jnp.bfloat16 else 8

    tm = min(tm, _round_up(M, sub))
    tn = min(tn, _round_up(N, 128))
    tk = min(tk, _round_up(K, 128))
    Mp, Kp, Np = _round_up(M, tm), _round_up(K, tk), _round_up(N, tn)

    if (Mp, Kp) != (M, K):
        x = jnp.pad(x, ((0, Mp - M), (0, Kp - K)))
    if (Kp, Np) != (K, N):
        w = jnp.pad(w, ((0, Kp - K), (0, Np - N)))
    if Np != N:
        b = jnp.pad(b, ((0, 0), (0, Np - N)))

    grid = (Mp // tm, Np // tn, Kp // tk)
    kernel = functools.partial(_linear_kernel, apply_act=apply_act)

    out = pl.pallas_call(
        kernel,
        out_shape=jax.ShapeDtypeStruct((Mp, Np), out_dtype),
        grid=grid,
        in_specs=[pl.BlockSpec((tm, tk), lambda i, j, k: (i, k)),
                  pl.BlockSpec((tk, tn), lambda i, j, k: (k, j)),
                  pl.BlockSpec((1, tn), lambda i, j, k: (0, j))],
        out_specs=pl.BlockSpec((tm, tn), lambda i, j, k: (i, j)),
        scratch_shapes=[pltpu.VMEM((tm, tn), jnp.float32)],
        compiler_params=pltpu.CompilerParams(
            dimension_semantics=("parallel", "parallel", "arbitrary")),
    )(x, w, b)
    return out[:M, :N]


# ---------------------------------------------------------------------------
# Wrapper
# ---------------------------------------------------------------------------
def _device_vmem_budget():
    """~75% of physical VMEM (v5e/v6e: 128 MiB -> 96 MiB, v7x: 64 -> 48)."""
    cap = None
    try:
        cap = getattr(pltpu.get_tpu_info(), "vmem_capacity_bytes", None)
    except Exception:
        cap = None
    if not cap:
        cap = 64 * 1024 * 1024  # conservative (v7x-sized) fallback
    return int(cap) * 3 // 4


def mlp_pallas(x, weights, biases, *, tile_b=256, vmem_budget=None):
    """Fused MLP forward.

    x: [B, D_in]; weights[l]: [D_in_l, D_out_l] (pre-transposed vs PyTorch);
    biases[l]: [1, D_out_l].  Returns [B, D_out_last].
    """
    num_layers = len(weights)
    # PyTorch MLP appends activation after Linear only when size != 1.
    act_flags = tuple(w.shape[1] != 1 for w in weights)

    B, d_in = x.shape
    out_dim = weights[-1].shape[1]
    out_dtype = x.dtype

    if vmem_budget is None:
        vmem_budget = _device_vmem_budget()

    sub = 16 if x.dtype == jnp.bfloat16 else 8
    b_aligned = _round_up(B, sub)

    param_bytes = sum(int(a.size) * a.dtype.itemsize for a in (*weights, *biases))
    widest = max([d_in] + [w.shape[1] for w in weights])
    out_cols = _round_up(out_dim, 128)  # upper bound on output tile width

    def footprint(tb):
        # Pipeliner double-buffers BlockSpec inputs (even constant-index
        # weights) -> count params twice; + double-buffered activation tiles
        # + f32 intermediates.
        io = (2 * tb * d_in * x.dtype.itemsize
              + 2 * tb * out_cols * x.dtype.itemsize)
        temps = 2 * tb * widest * 4
        return 2 * param_bytes + io + temps

    # Layers too wide to keep all weights VMEM-resident even at the smallest
    # batch tile -> per-layer M/N/K-tiled matmul path.
    if footprint(sub) > vmem_budget:
        h = x
        for w, b, act in zip(weights, biases, act_flags):
            h = _linear_act_pallas(h, w, b, act)
        return h

    # --- batch tile sizing: grow (fewer grid steps, less per-step overhead),
    # then shrink if over budget.
    tile_b = max(sub, min(_round_up(tile_b, sub), b_aligned))
    while tile_b < b_aligned:
        nxt = min(_round_up(tile_b * 2, sub), b_aligned)
        if footprint(nxt) > vmem_budget:
            break
        tile_b = nxt
    while tile_b > sub and footprint(tile_b) > vmem_budget:
        tile_b = max(sub, _round_up(tile_b // 2, sub))

    # v7x megacore: ("parallel",) only shards across the 2 TensorCores if the
    # grid has >= 2 steps; split a single-tile grid in two (cheap elsewhere).
    if tile_b >= b_aligned and b_aligned >= 2 * sub:
        tile_b = _round_up(b_aligned, 2 * sub) // 2

    padded_b = _round_up(B, tile_b)
    grid = (padded_b // tile_b,)

    # Lane-dense handling of the out_dim == 1 head (see _mlp_kernel): fold 128
    # batch rows onto the lane axis instead of zero-padding the output to 128.
    scalar_lane_out = (out_dim == 1 and tile_b % (sub * 128) == 0)

    weights = list(weights)
    biases = list(biases)
    padded_out = out_dim
    if scalar_lane_out:
        weights[-1] = weights[-1].T  # (K, 1) -> (1, K) row for mul + lane-reduce
    else:
        padded_out = _round_up(out_dim, 128)
        if padded_out != out_dim:
            weights[-1] = jnp.pad(weights[-1], ((0, 0), (0, padded_out - out_dim)))
            biases[-1] = jnp.pad(biases[-1], ((0, 0), (0, padded_out - out_dim)))

    if padded_b != B:
        x = jnp.pad(x, ((0, padded_b - B), (0, 0)))

    in_specs = [pl.BlockSpec((tile_b, d_in), lambda i: (i, 0))]
    operands = [x]
    for w, b in zip(weights, biases):
        # Constant block index -> DMA'd once, kept VMEM-resident across grid.
        in_specs.append(pl.BlockSpec(w.shape, lambda i: (0, 0)))
        in_specs.append(pl.BlockSpec(b.shape, lambda i: (0, 0)))
        operands.append(w)
        operands.append(b)

    if scalar_lane_out:
        out_shape = jax.ShapeDtypeStruct((padded_b // 128, 128), out_dtype)
        out_specs = pl.BlockSpec((tile_b // 128, 128), lambda i: (i, 0))
        out_bytes = padded_b * x.dtype.itemsize
    else:
        out_shape = jax.ShapeDtypeStruct((padded_b, padded_out), out_dtype)
        out_specs = pl.BlockSpec((tile_b, padded_out), lambda i: (i, 0))
        out_bytes = padded_b * padded_out * x.dtype.itemsize

    flops = 2 * padded_b * sum(w.shape[0] * w.shape[1] for w in weights)
    transcendentals = padded_b * sum(
        w.shape[1] for w, f in zip(weights, act_flags) if f)
    bytes_accessed = int(x.size) * x.dtype.itemsize + param_bytes + out_bytes

    kernel = functools.partial(_mlp_kernel, num_layers=num_layers,
                               act_flags=act_flags,
                               scalar_lane_out=scalar_lane_out)

    out = pl.pallas_call(
        kernel,
        out_shape=out_shape,
        grid=grid,
        in_specs=in_specs,
        out_specs=out_specs,
        compiler_params=pltpu.CompilerParams(
            # batch axis is embarrassingly parallel -> shard across v7x's 2 TCs
            dimension_semantics=("parallel",),
            vmem_limit_bytes=min(max(vmem_budget, 32 * 1024 * 1024),
                                 100 * 1024 * 1024),
        ),
        cost_estimate=pl.CostEstimate(
            flops=flops,
            transcendentals=transcendentals,
            bytes_accessed=bytes_accessed,
        ),
    )(*operands)

    if scalar_lane_out:
        return out.reshape(padded_b, 1)[:B]
    return out[:B, :out_dim]


# ---------------------------------------------------------------------------
# Params / reference
# ---------------------------------------------------------------------------
def init_mlp_params(key, input_size, output_sizes, dtype=jnp.float32):
    """Deterministic init mimicking nn.Linear.reset_parameters:
    W, b ~ U(-1/sqrt(fan_in), 1/sqrt(fan_in))."""
    weights, biases = [], []
    fan_in = input_size
    for size in output_sizes:
        key, kw, kb = jax.random.split(key, 3)
        bound = 1.0 / (fan_in ** 0.5)
        # Stored pre-transposed as [fan_in, size].
        w = jax.random.uniform(kw, (fan_in, size), dtype, -bound, bound)
        b = jax.random.uniform(kb, (1, size), dtype, -bound, bound)
        weights.append(w)
        biases.append(b)
        fan_in = size
    return weights, biases


def mlp_reference(x, weights, biases):
    """Plain-JAX reference of the PyTorch forward pass."""
    h = x
    for w, b in zip(weights, biases):
        h = h @ w + b
        if w.shape[1] != 1:
            h = h * jax.nn.sigmoid(h)  # SiLU
    return h


if __name__ == "__main__":
    # Shapes consistent with the module: input_size=32, output_sizes=(32,32,1)
    # -> [Linear+SiLU, Linear+SiLU, Linear].
    key = jax.random.PRNGKey(0)
    key, kx = jax.random.split(key)

    batch = 8
    input_size = 32
    output_sizes = (32, 32, 1)

    x = jax.random.normal(kx, (batch, input_size), jnp.float32)
    weights, biases = init_mlp_params(key, input_size, output_sizes)

    out = jax.block_until_ready(mlp_pallas(x, weights, biases))
    ref = mlp_reference(x, weights, biases)
    assert out.shape == (batch, output_sizes[-1])
    assert jnp.allclose(out, ref, atol=1e-5, rtol=1e-5), "mismatch vs reference"

    # Batch-padding / slicing path (B not a sublane multiple) + grid >= 2 rule.
    key, kx2 = jax.random.split(key)
    x2 = jax.random.normal(kx2, (10, input_size), jnp.float32)
    out2 = jax.block_until_ready(mlp_pallas(x2, weights, biases))
    ref2 = mlp_reference(x2, weights, biases)
    assert out2.shape == (10, 1)
    assert jnp.allclose(out2, ref2, atol=1e-5, rtol=1e-5), "mismatch (padded B)"

    # Large batch: exercises tile growth, >=2 grid steps (megacore on v7x) and
    # the lane-dense scalar-output path (no 128x zero-padded writeback).
    key, kx3 = jax.random.split(key)
    x3 = jax.random.normal(kx3, (4096, input_size), jnp.float32)
    out3 = jax.block_until_ready(mlp_pallas(x3, weights, biases))
    ref3 = mlp_reference(x3, weights, biases)
    assert out3.shape == (4096, 1)
    assert jnp.allclose(out3, ref3, atol=1e-4, rtol=1e-4), "mismatch (big B)"

    # Wide-layer fallback: force a tiny VMEM budget so the weights cannot be
    # VMEM-resident and the per-layer M/N/K-tiled matmul path is exercised.
    key, kx4 = jax.random.split(key)
    x4 = jax.random.normal(kx4, (64, 384), jnp.float32)
    w4, b4 = init_mlp_params(key, 384, (384, 1))
    out4 = jax.block_until_ready(mlp_pallas(x4, w4, b4, vmem_budget=512 * 1024))
    ref4 = mlp_reference(x4, w4, b4)
    assert out4.shape == (64, 1)
    assert jnp.allclose(out4, ref4, atol=1e-4, rtol=1e-4), "mismatch (layerwise)"

    # TODO(synk): dropout / BatchNorm1d / LayerNorm branches of the module are
    # disabled in the default config and not implemented here.
    print("KERNEL_OK")
</pallas_src>

<mosaic_0001>
module attributes {stable_mosaic.version = 11 : i64} {
  func.func @_mlp_kernel(%arg0: i32, %arg1: memref<8x32xf32, #tpu.memory_space<vmem>>, %arg2: memref<32x32xf32, #tpu.memory_space<vmem>>, %arg3: memref<1x32xf32, #tpu.memory_space<vmem>>, %arg4: memref<32x32xf32, #tpu.memory_space<vmem>>, %arg5: memref<1x32xf32, #tpu.memory_space<vmem>>, %arg6: memref<32x128xf32, #tpu.memory_space<vmem>>, %arg7: memref<1x128xf32, #tpu.memory_space<vmem>>, %arg8: memref<8x128xf32, #tpu.memory_space<vmem>>) attributes {dimension_semantics = [#tpu.dimension_semantics<parallel>], iteration_bounds = array<i64: 1>, scalar_prefetch = 0 : i64, scratch_operands = 0 : i64, tpu.core_type = #tpu.core_type<tc>, window_params = [{transform_indices = @transform_0, window_bounds = array<i64: 8, 32>}, {pipeline_mode = #tpu.pipeline_mode<synchronous>, transform_indices = @transform_1, window_bounds = array<i64: 32, 32>}, {pipeline_mode = #tpu.pipeline_mode<synchronous>, transform_indices = @transform_2, window_bounds = array<i64: 1, 32>}, {pipeline_mode = #tpu.pipeline_mode<synchronous>, transform_indices = @transform_3, window_bounds = array<i64: 32, 32>}, {pipeline_mode = #tpu.pipeline_mode<synchronous>, transform_indices = @transform_4, window_bounds = array<i64: 1, 32>}, {pipeline_mode = #tpu.pipeline_mode<synchronous>, transform_indices = @transform_5, window_bounds = array<i64: 32, 128>}, {pipeline_mode = #tpu.pipeline_mode<synchronous>, transform_indices = @transform_6, window_bounds = array<i64: 1, 128>}, {transform_indices = @transform_7, window_bounds = array<i64: 8, 128>}]} {
    %c0 = arith.constant 0 : index
    %c0_0 = arith.constant 0 : index
    %0 = vector.load %arg1[%c0, %c0_0] : memref<8x32xf32, #tpu.memory_space<vmem>>, vector<8x32xf32>
    %c0_1 = arith.constant 0 : index
    %c0_2 = arith.constant 0 : index
    %1 = vector.load %arg2[%c0_1, %c0_2] : memref<32x32xf32, #tpu.memory_space<vmem>>, vector<32x32xf32>
    %c0_3 = arith.constant 0 : index
    %c0_4 = arith.constant 0 : index
    %2 = vector.load %arg3[%c0_3, %c0_4] : memref<1x32xf32, #tpu.memory_space<vmem>>, vector<1x32xf32>
    %cst = arith.constant dense<0.000000e+00> : vector<8x32xf32>
    %3 = tpu.matmul %0, %1, %cst {dimension_numbers = #tpu.dot_dimension_numbers<[1], [0], [0], [1], [0, 0, 1, 1], [], []>} : vector<8x32xf32>, vector<32x32xf32>, vector<8x32xf32> -> vector<8x32xf32>
    %4 = vector.broadcast %2 : vector<1x32xf32> to vector<8x32xf32>
    %5 = arith.addf %3, %4 : vector<8x32xf32>
    %6 = arith.negf %5 : vector<8x32xf32>
    %7 = math.exp %6 : vector<8x32xf32>
    %cst_5 = arith.constant 1.000000e+00 : f32
    %8 = vector.broadcast %cst_5 : f32 to vector<8x32xf32>
    %9 = arith.addf %8, %7 : vector<8x32xf32>
    %10 = arith.divf %8, %9 : vector<8x32xf32>
    %11 = arith.mulf %5, %10 : vector<8x32xf32>
    %c0_6 = arith.constant 0 : index
    %c0_7 = arith.constant 0 : index
    %12 = vector.load %arg4[%c0_6, %c0_7] : memref<32x32xf32, #tpu.memory_space<vmem>>, vector<32x32xf32>
    %c0_8 = arith.constant 0 : index
    %c0_9 = arith.constant 0 : index
    %13 = vector.load %arg5[%c0_8, %c0_9] : memref<1x32xf32, #tpu.memory_space<vmem>>, vector<1x32xf32>
    %cst_10 = arith.constant dense<0.000000e+00> : vector<8x32xf32>
    %14 = tpu.matmul %11, %12, %cst_10 {dimension_numbers = #tpu.dot_dimension_numbers<[1], [0], [0], [1], [0, 0, 1, 1], [], []>} : vector<8x32xf32>, vector<32x32xf32>, vector<8x32xf32> -> vector<8x32xf32>
    %15 = vector.broadcast %13 : vector<1x32xf32> to vector<8x32xf32>
    %16 = arith.addf %14, %15 : vector<8x32xf32>
    %17 = arith.negf %16 : vector<8x32xf32>
    %18 = math.exp %17 : vector<8x32xf32>
    %cst_11 = arith.constant 1.000000e+00 : f32
    %19 = vector.broadcast %cst_11 : f32 to vector<8x32xf32>
    %20 = arith.addf %19, %18 : vector<8x32xf32>
    %21 = arith.divf %19, %20 : vector<8x32xf32>
    %22 = arith.mulf %16, %21 : vector<8x32xf32>
    %c0_12 = arith.constant 0 : index
    %c0_13 = arith.constant 0 : index
    %23 = vector.load %arg6[%c0_12, %c0_13] : memref<32x128xf32, #tpu.memory_space<vmem>>, vector<32x128xf32>
    %c0_14 = arith.constant 0 : index
    %c0_15 = arith.constant 0 : index
    %24 = vector.load %arg7[%c0_14, %c0_15] : memref<1x128xf32, #tpu.memory_space<vmem>>, vector<1x128xf32>
    %cst_16 = arith.constant dense<0.000000e+00> : vector<8x128xf32>
    %25 = tpu.matmul %22, %23, %cst_16 {dimension_numbers = #tpu.dot_dimension_numbers<[1], [0], [0], [1], [0, 0, 1, 1], [], []>} : vector<8x32xf32>, vector<32x128xf32>, vector<8x128xf32> -> vector<8x128xf32>
    %26 = vector.broadcast %24 : vector<1x128xf32> to vector<8x128xf32>
    %27 = arith.addf %25, %26 : vector<8x128xf32>
    %c0_17 = arith.constant 0 : index
    %c0_18 = arith.constant 0 : index
    %28 = vector.load %arg8[%c0_17, %c0_18] : memref<8x128xf32, #tpu.memory_space<vmem>>, vector<8x128xf32>
    tpu.vector_store %arg8[%c0_17, %c0_18], %27 {strides = array<i32>} : memref<8x128xf32, #tpu.memory_space<vmem>>, vector<8x128xf32>,
    return
  }
  func.func @transform_0(%arg0: i32) -> (i32, i32) {
    %c0_i32 = arith.constant 0 : i32
    %c0_i32_0 = arith.constant 0 : i32
    return %arg0, %c0_i32 : i32, i32
  }
  func.func @transform_1(%arg0: i32) -> (i32, i32) {
    %c0_i32 = arith.constant 0 : i32
    %c0_i32_0 = arith.constant 0 : i32
    %c0_i32_1 = arith.constant 0 : i32
    return %c0_i32, %c0_i32_0 : i32, i32
  }
  func.func @transform_2(%arg0: i32) -> (i32, i32) {
    %c0_i32 = arith.constant 0 : i32
    %c0_i32_0 = arith.constant 0 : i32
    %c0_i32_1 = arith.constant 0 : i32
    return %c0_i32, %c0_i32_0 : i32, i32
  }
  func.func @transform_3(%arg0: i32) -> (i32, i32) {
    %c0_i32 = arith.constant 0 : i32
    %c0_i32_0 = arith.constant 0 : i32
    %c0_i32_1 = arith.constant 0 : i32
    return %c0_i32, %c0_i32_0 : i32, i32
  }
  func.func @transform_4(%arg0: i32) -> (i32, i32) {
    %c0_i32 = arith.constant 0 : i32
    %c0_i32_0 = arith.constant 0 : i32
    %c0_i32_1 = arith.constant 0 : i32
    return %c0_i32, %c0_i32_0 : i32, i32
  }
  func.func @transform_5(%arg0: i32) -> (i32, i32) {
    %c0_i32 = arith.constant 0 : i32
    %c0_i32_0 = arith.constant 0 : i32
    %c0_i32_1 = arith.constant 0 : i32
    return %c0_i32, %c0_i32_0 : i32, i32
  }
  func.func @transform_6(%arg0: i32) -> (i32, i32) {
    %c0_i32 = arith.constant 0 : i32
    %c0_i32_0 = arith.constant 0 : i32
    %c0_i32_1 = arith.constant 0 : i32
    return %c0_i32, %c0_i32_0 : i32, i32
  }
  func.func @transform_7(%arg0: i32) -> (i32, i32) {
    %c0_i32 = arith.constant 0 : i32
    %c0_i32_0 = arith.constant 0 : i32
    return %arg0, %c0_i32 : i32, i32
  }
}

</mosaic_0001>

<llo_original>
// kernel: tpu_custom_call.1
$region0: #{tpu_custom_call.1}
  #allocation0 [shape = 'u32[]', space=smem, size = 0x4, offset = 0x4, fixed_abs, tag = 'smem constant byte address 0x4 - core index']
  #allocation1 [shape = 'u32[72,128]{1,0:T(1,128)}', space=vmem, size = 0x9000, scoped, tag = 'internal scratch']
  %s0 = inlined_call_operand.hbm [shape: f32[8,32], index: 0, kind: input, shape index: {}]
  %s1 = inlined_call_operand.hbm [shape: f32[32,32], index: 1, kind: input, shape index: {}]
  %s2 = inlined_call_operand.vmem [shape: f32[1,32], index: 2, kind: input, shape index: {}]
  %s3 = inlined_call_operand.hbm [shape: f32[32,32], index: 3, kind: input, shape index: {}]
  %s4 = inlined_call_operand.vmem [shape: f32[1,32], index: 4, kind: input, shape index: {}]
  %s5 = inlined_call_operand.hbm [shape: f32[32,128], index: 5, kind: input, shape index: {}]
  %s6 = inlined_call_operand.vmem [shape: f32[1,128], index: 6, kind: input, shape index: {}]
  %s7 = inlined_call_operand.hbm [shape: f32[8,128], index: 7, kind: output, shape index: {}]
  %s8 = sld [smem:[#allocation0]]
  $region54: #{tpu_custom_call.1} parent=0
    _
  %s10 = ssub.s32 1, %s8
  %s11 = scalar_select 0, %s10, %s8
  $region1: #{tpu_custom_call.1} parent=0
    #allocation2 [shape = 'u8[4096]{0}', space=vmem, size = 0x1000, scoped, tag = 'input window, operand 0, single buffered']
    #allocation3 [shape = 's32[1]{0}', space=sflag, size = 0x4, scoped, tag = 'scoped memory for tpu_custom_call.1']
    #allocation4 [shape = 's32[1]{0}', space=sflag, size = 0x4, scoped, tag = 'scoped memory for tpu_custom_call.1']
    #allocation5 [shape = 'u8[16384]{0}', space=vmem, size = 0x4000, scoped, tag = 'input window, operand 1, single buffered']
    #allocation6 [shape = 's32[1]{0}', space=sflag, size = 0x4, scoped, tag = 'scoped memory for tpu_custom_call.1']
    #allocation7 [shape = 'u8[16384]{0}', space=vmem, size = 0x4000, scoped, tag = 'input window, operand 3, single buffered']
    #allocation8 [shape = 'u8[16384]{0}', space=vmem, size = 0x4000, scoped, tag = 'input window, operand 5, single buffered']
    #allocation9 [shape = 's32[1]{0}', space=sflag, size = 0x4, scoped, tag = 'scoped memory for tpu_custom_call.1']
    #allocation10 [shape = 'u8[4096]{0}', space=vmem, size = 0x1000, scoped, tag = 'output window, operand 0, single buffered']
    %12 = vsyncpa [#allocation3], 0
    %13 = vsyncpa [#allocation6], 0
    %14 = vsyncpa [#allocation9], 0
    %15 = vsyncpa [#allocation4], 0
    // Predicated region
    $region2: #{tpu_custom_call.1} parent=1 // pred_check
      _
    $region3: #{tpu_custom_call.1} parent=1 // pred_check_branch
      %17 = sbr.rel (0) target = $region5
    $region4: #{tpu_custom_call.1} parent=1 // pred_region
      %19 = vsyncadd [#allocation3], 0
      %s21 = sshll.u32 %s0, 4
      %s22 = int_to_ptr.hbm [resolvable:$true] %s21
      %s23 = sshll.u32 [#allocation2], 4
      %s24 = int_to_ptr.vmem [resolvable:$true] %s23
      %26 = dma.hbm_to_vmem [thread:$0]  %s22, 128, %s24, [#allocation3]
    $region5: #{tpu_custom_call.1} parent=1 // pred_fallthru
      _
    // Predicated region
    $region6: #{tpu_custom_call.1} parent=1 // pred_check
      _
    $region7: #{tpu_custom_call.1} parent=1 // pred_check_branch
      %28 = sbr.rel (0) target = $region9
    $region8: #{tpu_custom_call.1} parent=1 // pred_region
      %30 = vsyncadd [#allocation6], 0
      %s31 = sshll.u32 %s1, 4
      %s32 = int_to_ptr.hbm [resolvable:$true] %s31
      %s33 = sshll.u32 [#allocation5], 4
      %s34 = int_to_ptr.vmem [resolvable:$true] %s33
      %39 = dma.hbm_to_vmem [thread:$0]  %s32, 512, %s34, [#allocation6], 128, 128, 8
    $region9: #{tpu_custom_call.1} parent=1 // pred_fallthru
      _
    // Predicated region
    $region10: #{tpu_custom_call.1} parent=1 // pred_check
      _
    $region11: #{tpu_custom_call.1} parent=1 // pred_check_branch
      %41 = sbr.rel (0) target = $region13
    $region12: #{tpu_custom_call.1} parent=1 // pred_region
      _
    $region13: #{tpu_custom_call.1} parent=1 // pred_fallthru
      _
    // Predicated region
    $region14: #{tpu_custom_call.1} parent=1 // pred_check
      _
    $region15: #{tpu_custom_call.1} parent=1 // pred_check_branch
      %43 = sbr.rel (0) target = $region17
    $region16: #{tpu_custom_call.1} parent=1 // pred_region
      %45 = vsyncadd [#allocation6], 0
      %s46 = sshll.u32 %s3, 4
      %s47 = int_to_ptr.hbm [resolvable:$true] %s46
      %s48 = sshll.u32 [#allocation7], 4
      %s49 = int_to_ptr.vmem [resolvable:$true] %s48
      %54 = dma.hbm_to_vmem [thread:$0]  %s47, 512, %s49, [#allocation6], 128, 128, 8
    $region17: #{tpu_custom_call.1} parent=1 // pred_fallthru
      _
    // Predicated region
    $region18: #{tpu_custom_call.1} parent=1 // pred_check
      _
    $region19: #{tpu_custom_call.1} parent=1 // pred_check_branch
      %56 = sbr.rel (0) target = $region21
    $region20: #{tpu_custom_call.1} parent=1 // pred_region
      _
    $region21: #{tpu_custom_call.1} parent=1 // pred_fallthru
      _
    // Predicated region
    $region22: #{tpu_custom_call.1} parent=1 // pred_check
      _
    $region23: #{tpu_custom_call.1} parent=1 // pred_check_branch
      %58 = sbr.rel (0) target = $region25
    $region24: #{tpu_custom_call.1} parent=1 // pred_region
      %60 = vsyncadd [#allocation9], 0
      %s61 = sshll.u32 %s5, 4
      %s62 = int_to_ptr.hbm [resolvable:$true] %s61
      %s63 = sshll.u32 [#allocation8], 4
      %s64 = int_to_ptr.vmem [resolvable:$true] %s63
      %69 = dma.hbm_to_vmem [thread:$0]  %s62, 512, %s64, [#allocation9], 128, 128, 8
    $region25: #{tpu_custom_call.1} parent=1 // pred_fallthru
      _
    // Predicated region
    $region26: #{tpu_custom_call.1} parent=1 // pred_check
      _
    $region27: #{tpu_custom_call.1} parent=1 // pred_check_branch
      %71 = sbr.rel (0) target = $region29
    $region28: #{tpu_custom_call.1} parent=1 // pred_region
      _
    $region29: #{tpu_custom_call.1} parent=1 // pred_fallthru
      _
    // Predicated region
    $region30: #{tpu_custom_call.1} parent=1 // pred_check
      _
    $region31: #{tpu_custom_call.1} parent=1 // pred_check_branch
      %73 = sbr.rel (0) target = $region33
    $region32: #{tpu_custom_call.1} parent=1 // pred_region
      %75 = dma.done [#allocation3], 128
    $region33: #{tpu_custom_call.1} parent=1 // pred_fallthru
      _
    // Predicated region
    $region34: #{tpu_custom_call.1} parent=1 // pred_check
      _
    $region35: #{tpu_custom_call.1} parent=1 // pred_check_branch
      %77 = sbr.rel (0) target = $region37
    $region36: #{tpu_custom_call.1} parent=1 // pred_region
      %79 = dma.done [#allocation6], 512
    $region37: #{tpu_custom_call.1} parent=1 // pred_fallthru
      _
    // Predicated region
    $region38: #{tpu_custom_call.1} parent=1 // pred_check
      _
    $region39: #{tpu_custom_call.1} parent=1 // pred_check_branch
      %81 = sbr.rel (0) target = $region41
    $region40: #{tpu_custom_call.1} parent=1 // pred_region
      %83 = dma.done [#allocation6], 512
    $region41: #{tpu_custom_call.1} parent=1 // pred_fallthru
      _
    // Predicated region
    $region42: #{tpu_custom_call.1} parent=1 // pred_check
      _
    $region43: #{tpu_custom_call.1} parent=1 // pred_check_branch
      %85 = sbr.rel (0) target = $region45
    $region44: #{tpu_custom_call.1} parent=1 // pred_region
      %87 = dma.done [#allocation9], 512
    $region45: #{tpu_custom_call.1} parent=1 // pred_fallthru
      _
    %v88 = vld [vmem:[#allocation2] sm:$0xff]
    %v89 = vld [vmem:[#allocation5] sm:$0xff]
    %v90 = vld [vmem:[#allocation5 + $0x8] sm:$0xff]
    %v91 = vld [vmem:[#allocation5 + $0x10] sm:$0xff]
    %v92 = vld [vmem:[#allocation5 + $0x18] sm:$0xff]
    %v93 = vld [vmem:[%s2] sm:$0x1]
    %v95 = vperm.slane %v93, 0
    %vm97 = vcmask 261120
    %v99 = vsel %vm97, %v88, 0
    %101 = vmatpush.msra.mxu0 0.0
    %102 = vmatpush.msra.mxu0 0.0
    %103 = vmatpush.msra.mxu0 0.0
    %104 = vmatpush.msra.mxu0 0.0
    %105 = vmatpush.msra.mxu0 0.0
    %106 = vmatpush.msra.mxu0 0.0
    %107 = vmatpush.msra.mxu0 0.0
    %108 = vmatpush.msra.mxu0 0.0
    %109 = vmatpush.msra.mxu0 0.0
    %110 = vmatpush.msra.mxu0 0.0
    %111 = vmatpush.msra.mxu0 0.0
    %112 = vmatpush.msra.mxu0 0.0
    %113 = vmatpush.msra.mxu0 %v92
    %114 = vmatpush.msra.mxu0 %v91
    %115 = vmatpush.msra.mxu0 %v90
    %116 = vmatpush.msra.mxu0 %v89
    %117 = vmatmul.f32.gmra.mxu0 %v99
    %v118 = vpop.f32.mrf.mxu0
    %v119 = vadd.f32 %v95, %v118
    %120 = vdwg.mxu0
    %v121 = vxor.u32 %v119, 2147483648
    %v122 = vmul.f32 %v121, 1.442695
    %v123 = vpow.pop %v122
    %v124 = vadd.f32 %v123, 1.0
    %v125 = vrcp.pop %v124
    %v126 = vmul.f32 %v124, %v125
    %v127 = vsub.f32 1.0, %v126
    %v128 = vmul.f32 %v125, %v127
    %v129 = vadd.f32 %v125, %v128
    %vm130 = vweird.f32 %v124
    %vm131 = vweird.f32 %v125
    %vm132 = vmor %vm130, %vm131
    %v133 = vsel %vm132, %v125, %v129
    %v134 = vand.u32 2147483647, %v124
    %vm135 = vcmp.eq.f32.partialorder %v134, 8.507059e+37
    %v136 = vand.u32 %v124, 2147483648
    %v137 = vor.u32 1.1754944e-38, %v136
    %v138 = vsel %vm135, %v137, %v133
    %v139 = vmul.f32 1.0, %v138
    %v140 = vmul.f32 %v119, %v139
    %v141 = vld [vmem:[#allocation7] sm:$0xff]
    %v142 = vld [vmem:[#allocation7 + $0x8] sm:$0xff]
    %v143 = vld [vmem:[#allocation7 + $0x10] sm:$0xff]
    %v144 = vld [vmem:[#allocation7 + $0x18] sm:$0xff]
    %v145 = vld [vmem:[%s4] sm:$0x1]
    %v147 = vperm.slane %v145, 0
    %v150 = vsel %vm97, %v140, 0
    %152 = vmatpush.msra.mxu0 0.0
    %153 = vmatpush.msra.mxu0 0.0
    %154 = vmatpush.msra.mxu0 0.0
    %155 = vmatpush.msra.mxu0 0.0
    %156 = vmatpush.msra.mxu0 0.0
    %157 = vmatpush.msra.mxu0 0.0
    %158 = vmatpush.msra.mxu0 0.0
    %159 = vmatpush.msra.mxu0 0.0
    %160 = vmatpush.msra.mxu0 0.0
    %161 = vmatpush.msra.mxu0 0.0
    %162 = vmatpush.msra.mxu0 0.0
    %163 = vmatpush.msra.mxu0 0.0
    %164 = vmatpush.msra.mxu0 %v144
    %165 = vmatpush.msra.mxu0 %v143
    %166 = vmatpush.msra.mxu0 %v142
    %167 = vmatpush.msra.mxu0 %v141
    %168 = vmatmul.f32.gmra.mxu0 %v150
    %v169 = vpop.f32.mrf.mxu0
    %v170 = vadd.f32 %v147, %v169
    %171 = vdwg.mxu0
    %v172 = vxor.u32 %v170, 2147483648
    %v173 = vmul.f32 %v172, 1.442695
    %v174 = vpow.pop %v173
    %v175 = vadd.f32 %v174, 1.0
    %v176 = vrcp.pop %v175
    %v177 = vmul.f32 %v175, %v176
    %v178 = vsub.f32 1.0, %v177
    %v179 = vmul.f32 %v176, %v178
    %v180 = vadd.f32 %v176, %v179
    %vm181 = vweird.f32 %v175
    %vm182 = vweird.f32 %v176
    %vm183 = vmor %vm181, %vm182
    %v184 = vsel %vm183, %v176, %v180
    %v185 = vand.u32 2147483647, %v175
    %vm186 = vcmp.eq.f32.partialorder %v185, 8.507059e+37
    %v187 = vand.u32 %v175, 2147483648
    %v188 = vor.u32 1.1754944e-38, %v187
    %v189 = vsel %vm186, %v188, %v184
    %v190 = vmul.f32 1.0, %v189
    %v191 = vmul.f32 %v170, %v190
    %v192 = vld [vmem:[#allocation8] sm:$0xff]
    %v193 = vld [vmem:[#allocation8 + $0x8] sm:$0xff]
    %v194 = vld [vmem:[#allocation8 + $0x10] sm:$0xff]
    %v195 = vld [vmem:[#allocation8 + $0x18] sm:$0xff]
    %v196 = vld [vmem:[%s6] sm:$0x1]
    %v198 = vperm.slane %v196, 0
    %v201 = vsel %vm97, %v191, 0
    %203 = vmatpush.msra.mxu0 0.0
    %204 = vmatpush.msra.mxu0 0.0
    %205 = vmatpush.msra.mxu0 0.0
    %206 = vmatpush.msra.mxu0 0.0
    %207 = vmatpush.msra.mxu0 0.0
    %208 = vmatpush.msra.mxu0 0.0
    %209 = vmatpush.msra.mxu0 0.0
    %210 = vmatpush.msra.mxu0 0.0
    %211 = vmatpush.msra.mxu0 0.0
    %212 = vmatpush.msra.mxu0 0.0
    %213 = vmatpush.msra.mxu0 0.0
    %214 = vmatpush.msra.mxu0 0.0
    %215 = vmatpush.msra.mxu0 %v195
    %216 = vmatpush.msra.mxu0 %v194
    %217 = vmatpush.msra.mxu0 %v193
    %218 = vmatpush.msra.mxu0 %v192
    %219 = vmatmul.f32.gmra.mxu0 %v201
    %v220 = vpop.f32.mrf.mxu0
    %v221 = vadd.f32 %v198, %v220
    %222 = vdwg.mxu0
    %223 = vst [vmem:[#allocation10] sm:$0xff] %v221
    // Predicated region
    $region46: #{tpu_custom_call.1} parent=1 // pred_check
      _
    $region47: #{tpu_custom_call.1} parent=1 // pred_check_branch
      %225 = sbr.rel (0) target = $region49
    $region48: #{tpu_custom_call.1} parent=1 // pred_region
      %227 = vsyncadd [#allocation4], 0
      %s229 = sshll.u32 [#allocation10], 4
      %s230 = int_to_ptr.vmem [resolvable:$true] %s229
      %s231 = sshll.u32 %s7, 4
      %s232 = int_to_ptr.hbm [resolvable:$true] %s231
      %234 = dma.vmem_to_hbm [thread:$0]  %s230, 128, %s232, [#allocation4]
    $region49: #{tpu_custom_call.1} parent=1 // pred_fallthru
      _
    // Predicated region
    $region50: #{tpu_custom_call.1} parent=1 // pred_check
      _
    $region51: #{tpu_custom_call.1} parent=1 // pred_check_branch
      %236 = sbr.rel (0) target = $region53
    $region52: #{tpu_custom_call.1} parent=1 // pred_region
      %238 = dma.done [#allocation4], 128
    $region53: #{tpu_custom_call.1} parent=1 // pred_fallthru
      _
    %239 = vsyncpa [#allocation3], 1
    %240 = vsyncpa [#allocation6], 1
    %241 = vsyncpa [#allocation9], 1
    %242 = vsyncpa [#allocation4], 1

</llo_original>
